<compile_context>
chip_gen: v7x
topology: tpu7x:2x2x1
jax: 0.10.0
libtpu: 0.0.40
codegen_flags: <defaults>
</compile_context>

<pallas_src>
import functools

import jax
import jax.numpy as jnp
from jax.experimental import pallas as pl
from jax.experimental.pallas import tpu as pltpu


def _round_up(x, m):
    return (x + m - 1) // m * m


def _vmem_capacity_bytes():
    """Physical VMEM of the current chip; conservative fallback = v7x (64 MiB)."""
    try:
        info = pltpu.get_tpu_info()
        cap = getattr(info, "vmem_capacity_bytes", None)
        if cap:
            return int(cap)
    except Exception:
        pass
    return 64 * 1024 * 1024


def _vmem_limit_bytes(capacity):
    # ~48 MiB on v7x (64 MiB phys), ~96 MiB on v5e/v6e (128 MiB phys).
    return int(max(32 << 20, min(capacity * 3 // 4, capacity - (8 << 20))))


def _choose_batch_tile(B, bytes_per_row, fixed_bytes, vmem_capacity):
    """Largest batch tile whose working set (incl. pinned weights & temporaries)
    stays within ~half of physical VMEM; keep >=2 grid steps for megacore when
    the batch is big enough to split on 8-row boundaries."""
    budget = max(vmem_capacity // 2 - fixed_bytes, 1 << 20)
    tb = budget // max(bytes_per_row, 1)
    if tb < B:
        tb = max(8, (min(tb, 1024) // 8) * 8)
        tb = min(tb, B)
    else:
        tb = B
    if B >= 16:  # v7x has 2 TensorCores: give the "parallel" grid >=2 steps.
        tb = min(tb, _round_up(pl.cdiv(B, 2), 8))
    return max(int(tb), 1)


# ---------------------------------------------------------------------------
# Single fused kernel: embedding gather + all conv branches + max-over-time
# + bias + final projection.
# ---------------------------------------------------------------------------
def cnn_classify_kernel(ids_ref, table_ref, convw_ref, bias_ref, projw_ref, out_ref,
                        *, k_list, c_pad_list):
    # ids_ref:   (TB, L)               int32
    # table_ref: (V_pad, D_pad)        bf16   (pad_id row is zero)
    # convw_ref: (D_pad, N_pad)        bf16   (per-branch, per-tap 128-aligned blocks)
    # bias_ref:  (1, C_pad_total)      f32
    # projw_ref: (C_pad_total, V_out)  bf16
    # out_ref:   (TB, V_out)           f32
    TB, L = ids_ref.shape
    v_pad = table_ref.shape[0]
    n_pad = convw_ref.shape[1]

    # ---- Embedding gather, fully in VMEM: one-hot @ table on the MXU.
    # (Exact: f32 accumulation of one-hot selection reproduces the bf16 rows.)
    ids = ids_ref[...]
    onehot = (ids[:, :, None] ==
              jax.lax.broadcasted_iota(jnp.int32, (TB, L, v_pad), 2))
    onehot = onehot.astype(table_ref.dtype).reshape(TB * L, v_pad)
    emb = jnp.dot(onehot, table_ref[...],
                  preferred_element_type=jnp.float32)            # (TB*L, D_pad)

    # ---- One wide-N MXU contraction over D for every tap of every branch:
    #   y[b, t, branch_base + kk*C_pad + c] = emb[b, t, :] @ W_branch[c, :, kk]
    y = jnp.dot(emb.astype(convw_ref.dtype), convw_ref[...],
                preferred_element_type=jnp.float32).reshape(TB, L, n_pad)

    # ---- Per-branch tap accumulation (128-lane-aligned slices -> plain VPU adds)
    #      followed by max over time; bias added after the max (equivalent).
    feat_blocks = []
    col = 0
    for k, cp in zip(k_list, c_pad_list):
        l_out = L - k + 1
        acc = jax.lax.slice(y, (0, 0, col), (TB, l_out, col + cp))
        for kk in range(1, k):
            acc = acc + jax.lax.slice(
                y, (0, kk, col + kk * cp), (TB, kk + l_out, col + (kk + 1) * cp))
        col += k * cp
        feat_blocks.append(jnp.max(acc, axis=1))                 # (TB, cp)
    feats = jnp.concatenate(feat_blocks, axis=-1) + bias_ref[...]  # (TB, C_pad_total)

    # ---- Fused bias-free projection; single lane-dense unmasked store.
    out_ref[...] = jnp.dot(feats.astype(projw_ref.dtype), projw_ref[...],
                           preferred_element_type=jnp.float32)


# ---------------------------------------------------------------------------
# One-time parameter preprocessing: transposes / lane-aligned packing / padding
# / bf16 casts (all hoisted out of the forward pass).
# ---------------------------------------------------------------------------
def prepare_params(emb_table, conv_params, k_list, proj_w, *, pad_id=0,
                   compute_dtype=jnp.bfloat16):
    V_src, D = emb_table.shape
    d_pad = _round_up(D, 128)            # MXU contraction dim -> multiple of 128
    v_src_pad = _round_up(V_src, 128)    # gather-matmul contraction dim

    table = jnp.zeros((v_src_pad, d_pad), jnp.float32)
    table = table.at[:V_src, :D].set(emb_table)
    table = table.at[pad_id, :].set(0.0)               # nn.Embedding padding_idx
    table = table.astype(compute_dtype)

    c_list = [int(w.shape[0]) for (w, _) in conv_params]
    c_pad_list = [_round_up(c, 128) for c in c_list]    # lane-aligned branch blocks
    c_pad_total = sum(c_pad_list)
    n_pad = sum(k * cp for k, cp in zip(k_list, c_pad_list))

    w_pack = jnp.zeros((d_pad, n_pad), jnp.float32)
    bias_pack = jnp.zeros((1, c_pad_total), jnp.float32)
    col = 0
    feat_col = 0
    for (w, b), k, c, cp in zip(conv_params, k_list, c_list, c_pad_list):
        for kk in range(k):                              # torch Conv1d weight (C, D, K)
            w_pack = w_pack.at[:D, col + kk * cp: col + kk * cp + c].set(
                jnp.transpose(w[:, :, kk]))              # (D, C) per tap, 128-aligned
        bias_pack = bias_pack.at[0, feat_col:feat_col + c].set(b)
        col += k * cp
        feat_col += cp
    w_pack = w_pack.astype(compute_dtype)

    V = int(proj_w.shape[0])
    v_out_pad = _round_up(V, 128)
    proj_pack = jnp.zeros((c_pad_total, v_out_pad), jnp.float32)
    fcol, src = 0, 0
    for c, cp in zip(c_list, c_pad_list):                # re-index rows to padded layout
        proj_pack = proj_pack.at[fcol:fcol + c, :V].set(
            jnp.transpose(proj_w[:, src:src + c]))
        fcol += cp
        src += c
    proj_pack = proj_pack.astype(compute_dtype)

    return dict(
        emb_table=table, conv_w=w_pack, conv_b=bias_pack, proj_w=proj_pack,
        k_list=tuple(int(k) for k in k_list), c_list=tuple(c_list),
        c_pad_list=tuple(c_pad_list), trg_vocab=V, compute_dtype=compute_dtype,
    )


def cnn_classify_forward(x_train, params):
    """x_train: (B, L) int token ids -> logits (B, trg_vocab)."""
    B, L = x_train.shape
    if max(params["k_list"]) > L:
        raise ValueError("conv kernel size larger than sequence length")

    table = params["emb_table"]
    convw = params["conv_w"]
    bias = params["conv_b"]
    projw = params["proj_w"]
    v_pad, d_pad = table.shape
    n_pad = convw.shape[1]
    c_pad_tot = bias.shape[1]
    v_out_pad = projw.shape[1]

    cap = _vmem_capacity_bytes()
    # Per-batch-row working set: one-hot (bf16) + emb (f32 acc + bf16 copy)
    # + y (f32) + per-branch acc slices + ids/out (double-buffered).
    bytes_per_row = (L * (2 * v_pad + 6 * d_pad + 4 * n_pad + 4 * c_pad_tot)
                     + 8 * c_pad_tot + 8 * v_out_pad + 8 * L)
    # Pinned (grid-invariant) inputs, counted double-buffered.
    fixed_bytes = 2 * (v_pad * d_pad * 2 + d_pad * n_pad * 2
                       + 4 * c_pad_tot + c_pad_tot * v_out_pad * 2)
    tb = _choose_batch_tile(B, bytes_per_row, fixed_bytes, cap)

    kernel = functools.partial(cnn_classify_kernel,
                               k_list=params["k_list"],
                               c_pad_list=params["c_pad_list"])
    logits_pad = pl.pallas_call(
        kernel,
        out_shape=jax.ShapeDtypeStruct((B, v_out_pad), jnp.float32),
        grid=(pl.cdiv(B, tb),),
        in_specs=[
            pl.BlockSpec((tb, L), lambda i: (i, 0)),             # token ids (batch-tiled)
            pl.BlockSpec((v_pad, d_pad), lambda i: (0, 0)),      # pinned emb table
            pl.BlockSpec((d_pad, n_pad), lambda i: (0, 0)),      # pinned packed conv W
            pl.BlockSpec((1, c_pad_tot), lambda i: (0, 0)),      # pinned packed bias
            pl.BlockSpec((c_pad_tot, v_out_pad), lambda i: (0, 0)),  # pinned proj W
        ],
        out_specs=pl.BlockSpec((tb, v_out_pad), lambda i: (i, 0)),
        compiler_params=pltpu.CompilerParams(
            dimension_semantics=("parallel",),
            vmem_limit_bytes=_vmem_limit_bytes(cap)),
    )(x_train.astype(jnp.int32), table, convw, bias, projw)
    return logits_pad[:, :params["trg_vocab"]]


if __name__ == "__main__":
    # Small hparams consistent with the module
    B, L = 2, 8
    src_vocab_size, d_word_vec, pad_id = 16, 32, 0
    out_c_list, k_list = [16, 32], [3, 5]
    trg_vocab_size = 10
    init_range = 0.1

    key = jax.random.PRNGKey(0)
    keys = jax.random.split(key, 8)

    # nn.Embedding(src_vocab, d_word_vec, padding_idx=pad_id)
    emb_table = jax.random.uniform(keys[0], (src_vocab_size, d_word_vec),
                                   jnp.float32, -init_range, init_range)
    emb_table = emb_table.at[pad_id].set(0.0)

    # nn.Conv1d(d_word_vec, c, k): weight (C_out, C_in, K), bias included
    conv_params = []
    for i, (c, k) in enumerate(zip(out_c_list, k_list)):
        w = jax.random.uniform(keys[1 + i], (c, d_word_vec, k),
                               jnp.float32, -init_range, init_range)
        b = jax.random.uniform(keys[3 + i], (c,), jnp.float32, -init_range, init_range)
        conv_params.append((w, b))

    # nn.Linear(sum(out_c_list), trg_vocab, bias=False): weight (V, F)
    proj_w = jax.random.uniform(keys[5], (trg_vocab_size, sum(out_c_list)),
                                jnp.float32, -init_range, init_range)

    x_train = jax.random.randint(keys[6], (B, L), 0, src_vocab_size, dtype=jnp.int32)

    params = prepare_params(emb_table, conv_params, k_list, proj_w, pad_id=pad_id)
    logits = cnn_classify_forward(x_train, params)
    logits = jax.block_until_ready(logits)
    assert logits.shape == (B, trg_vocab_size)

    # Plain-JAX reference mirroring the torch forward, computed in f32 from the
    # same bf16-quantized parameters/activations used by the kernel.
    embq = emb_table.astype(jnp.bfloat16).astype(jnp.float32)
    word_ref = jnp.take(embq, x_train, axis=0)                     # (B, L, D)
    outs = []
    for (w, b), k in zip(conv_params, k_list):
        wq = w.astype(jnp.bfloat16).astype(jnp.float32)
        L_out = L - k + 1
        cols = [jnp.einsum('bkd,cdk->bc', word_ref[:, t:t + k, :], wq) + b
                for t in range(L_out)]
        conv = jnp.stack(cols, axis=-1)                            # (B, C, L_out)
        outs.append(conv.max(axis=-1))
    feats_ref = jnp.concatenate(outs, axis=-1)
    feats_ref = feats_ref.astype(jnp.bfloat16).astype(jnp.float32)
    projq = proj_w.astype(jnp.bfloat16).astype(jnp.float32)
    logits_ref = feats_ref @ projq.T

    assert jnp.allclose(logits, logits_ref, atol=2e-3, rtol=2e-3), "mismatch vs reference"

    print("KERNEL_OK")
</pallas_src>

<mosaic_0001>
module attributes {stable_mosaic.version = 11 : i64} {
  func.func @cnn_classify_kernel(%arg0: i32, %arg1: memref<2x8xi32, #tpu.memory_space<vmem>>, %arg2: memref<128x128xbf16, #tpu.memory_space<vmem>>, %arg3: memref<128x1024xbf16, #tpu.memory_space<vmem>>, %arg4: memref<1x256xf32, #tpu.memory_space<vmem>>, %arg5: memref<256x128xbf16, #tpu.memory_space<vmem>>, %arg6: memref<2x128xf32, #tpu.memory_space<vmem>>) attributes {dimension_semantics = [#tpu.dimension_semantics<parallel>], iteration_bounds = array<i64: 1>, scalar_prefetch = 0 : i64, scratch_operands = 0 : i64, tpu.core_type = #tpu.core_type<tc>, window_params = [{transform_indices = @transform_0, window_bounds = array<i64: 2, 8>}, {pipeline_mode = #tpu.pipeline_mode<synchronous>, transform_indices = @transform_1, window_bounds = array<i64: 128, 128>}, {pipeline_mode = #tpu.pipeline_mode<synchronous>, transform_indices = @transform_2, window_bounds = array<i64: 128, 1024>}, {pipeline_mode = #tpu.pipeline_mode<synchronous>, transform_indices = @transform_3, window_bounds = array<i64: 1, 256>}, {pipeline_mode = #tpu.pipeline_mode<synchronous>, transform_indices = @transform_4, window_bounds = array<i64: 256, 128>}, {transform_indices = @transform_5, window_bounds = array<i64: 2, 128>}]} {
    %c0 = arith.constant 0 : index
    %c0_0 = arith.constant 0 : index
    %0 = vector.load %arg1[%c0, %c0_0] : memref<2x8xi32, #tpu.memory_space<vmem>>, vector<2x8xi32>
    %1 = vector.shape_cast %0 : vector<2x8xi32> to vector<2x8x1xi32>
    %2 = tpu.iota {dimensions = array<i32: 2>} : vector<2x8x128xi32>
    %3 = vector.broadcast %1 : vector<2x8x1xi32> to vector<2x8x128xi32>
    %4 = arith.cmpi eq, %3, %2 : vector<2x8x128xi32>
    %5 = arith.extui %4 : vector<2x8x128xi1> to vector<2x8x128xi32>
    %6 = arith.sitofp %5 : vector<2x8x128xi32> to vector<2x8x128xf32>
    %7 = arith.truncf %6 : vector<2x8x128xf32> to vector<2x8x128xbf16>
    %8 = vector.shape_cast %7 : vector<2x8x128xbf16> to vector<16x128xbf16>
    %c0_1 = arith.constant 0 : index
    %c0_2 = arith.constant 0 : index
    %9 = vector.load %arg2[%c0_1, %c0_2] : memref<128x128xbf16, #tpu.memory_space<vmem>>, vector<128x128xbf16>
    %cst = arith.constant dense<0.000000e+00> : vector<16x128xf32>
    %10 = tpu.matmul %8, %9, %cst {dimension_numbers = #tpu.dot_dimension_numbers<[1], [0], [0], [1], [0, 0, 1, 1], [], []>} : vector<16x128xbf16>, vector<128x128xbf16>, vector<16x128xf32> -> vector<16x128xf32>
    %11 = arith.truncf %10 : vector<16x128xf32> to vector<16x128xbf16>
    %c0_3 = arith.constant 0 : index
    %c0_4 = arith.constant 0 : index
    %12 = vector.load %arg3[%c0_3, %c0_4] : memref<128x1024xbf16, #tpu.memory_space<vmem>>, vector<128x1024xbf16>
    %cst_5 = arith.constant dense<0.000000e+00> : vector<16x1024xf32>
    %13 = tpu.matmul %11, %12, %cst_5 {dimension_numbers = #tpu.dot_dimension_numbers<[1], [0], [0], [1], [0, 0, 1, 1], [], []>} : vector<16x128xbf16>, vector<128x1024xbf16>, vector<16x1024xf32> -> vector<16x1024xf32>
    %14 = vector.shape_cast %13 : vector<16x1024xf32> to vector<2x8x1024xf32>
    %15 = vector.extract_strided_slice %14 {offsets = [0, 0, 0], sizes = [2, 6, 128], strides = [1, 1, 1]} : vector<2x8x1024xf32> to vector<2x6x128xf32>
    %16 = vector.extract_strided_slice %14 {offsets = [0, 1, 128], sizes = [2, 6, 128], strides = [1, 1, 1]} : vector<2x8x1024xf32> to vector<2x6x128xf32>
    %17 = arith.addf %15, %16 : vector<2x6x128xf32>
    %18 = vector.extract_strided_slice %14 {offsets = [0, 2, 256], sizes = [2, 6, 128], strides = [1, 1, 1]} : vector<2x8x1024xf32> to vector<2x6x128xf32>
    %19 = arith.addf %17, %18 : vector<2x6x128xf32>
    %cst_6 = arith.constant dense<0xFF800000> : vector<2x128xf32>
    %20 = vector.multi_reduction <maximumf>, %19, %cst_6 [1] : vector<2x6x128xf32> to vector<2x128xf32>
    %21 = vector.extract_strided_slice %14 {offsets = [0, 0, 384], sizes = [2, 4, 128], strides = [1, 1, 1]} : vector<2x8x1024xf32> to vector<2x4x128xf32>
    %22 = vector.extract_strided_slice %14 {offsets = [0, 1, 512], sizes = [2, 4, 128], strides = [1, 1, 1]} : vector<2x8x1024xf32> to vector<2x4x128xf32>
    %23 = arith.addf %21, %22 : vector<2x4x128xf32>
    %24 = vector.extract_strided_slice %14 {offsets = [0, 2, 640], sizes = [2, 4, 128], strides = [1, 1, 1]} : vector<2x8x1024xf32> to vector<2x4x128xf32>
    %25 = arith.addf %23, %24 : vector<2x4x128xf32>
    %26 = vector.extract_strided_slice %14 {offsets = [0, 3, 768], sizes = [2, 4, 128], strides = [1, 1, 1]} : vector<2x8x1024xf32> to vector<2x4x128xf32>
    %27 = arith.addf %25, %26 : vector<2x4x128xf32>
    %28 = vector.extract_strided_slice %14 {offsets = [0, 4, 896], sizes = [2, 4, 128], strides = [1, 1, 1]} : vector<2x8x1024xf32> to vector<2x4x128xf32>
    %29 = arith.addf %27, %28 : vector<2x4x128xf32>
    %cst_7 = arith.constant dense<0xFF800000> : vector<2x128xf32>
    %30 = vector.multi_reduction <maximumf>, %29, %cst_7 [1] : vector<2x4x128xf32> to vector<2x128xf32>
    %31 = tpu.concatenate %20, %30 in 1 : vector<2x128xf32>, vector<2x128xf32> -> vector<2x256xf32>
    %c0_8 = arith.constant 0 : index
    %c0_9 = arith.constant 0 : index
    %32 = vector.load %arg4[%c0_8, %c0_9] : memref<1x256xf32, #tpu.memory_space<vmem>>, vector<1x256xf32>
    %33 = vector.broadcast %32 : vector<1x256xf32> to vector<2x256xf32>
    %34 = arith.addf %31, %33 : vector<2x256xf32>
    %35 = arith.truncf %34 : vector<2x256xf32> to vector<2x256xbf16>
    %c0_10 = arith.constant 0 : index
    %c0_11 = arith.constant 0 : index
    %36 = vector.load %arg5[%c0_10, %c0_11] : memref<256x128xbf16, #tpu.memory_space<vmem>>, vector<256x128xbf16>
    %cst_12 = arith.constant dense<0.000000e+00> : vector<2x128xf32>
    %37 = tpu.matmul %35, %36, %cst_12 {dimension_numbers = #tpu.dot_dimension_numbers<[1], [0], [0], [1], [0, 0, 1, 1], [], []>} : vector<2x256xbf16>, vector<256x128xbf16>, vector<2x128xf32> -> vector<2x128xf32>
    %c0_13 = arith.constant 0 : index
    %c0_14 = arith.constant 0 : index
    %38 = vector.load %arg6[%c0_13, %c0_14] : memref<2x128xf32, #tpu.memory_space<vmem>>, vector<2x128xf32>
    tpu.vector_store %arg6[%c0_13, %c0_14], %37 {strides = array<i32>} : memref<2x128xf32, #tpu.memory_space<vmem>>, vector<2x128xf32>,
    return
  }
  func.func @transform_0(%arg0: i32) -> (i32, i32) {
    %c0_i32 = arith.constant 0 : i32
    %c0_i32_0 = arith.constant 0 : i32
    return %arg0, %c0_i32 : i32, i32
  }
  func.func @transform_1(%arg0: i32) -> (i32, i32) {
    %c0_i32 = arith.constant 0 : i32
    %c0_i32_0 = arith.constant 0 : i32
    %c0_i32_1 = arith.constant 0 : i32
    return %c0_i32, %c0_i32_0 : i32, i32
  }
  func.func @transform_2(%arg0: i32) -> (i32, i32) {
    %c0_i32 = arith.constant 0 : i32
    %c0_i32_0 = arith.constant 0 : i32
    %c0_i32_1 = arith.constant 0 : i32
    return %c0_i32, %c0_i32_0 : i32, i32
  }
  func.func @transform_3(%arg0: i32) -> (i32, i32) {
    %c0_i32 = arith.constant 0 : i32
    %c0_i32_0 = arith.constant 0 : i32
    %c0_i32_1 = arith.constant 0 : i32
    return %c0_i32, %c0_i32_0 : i32, i32
  }
  func.func @transform_4(%arg0: i32) -> (i32, i32) {
    %c0_i32 = arith.constant 0 : i32
    %c0_i32_0 = arith.constant 0 : i32
    %c0_i32_1 = arith.constant 0 : i32
    return %c0_i32, %c0_i32_0 : i32, i32
  }
  func.func @transform_5(%arg0: i32) -> (i32, i32) {
    %c0_i32 = arith.constant 0 : i32
    %c0_i32_0 = arith.constant 0 : i32
    return %arg0, %c0_i32 : i32, i32
  }
}

</mosaic_0001>

<llo_original>
// kernel: tpu_custom_call.1
$region0: #{tpu_custom_call.1}
  #allocation0 [shape = 'u32[]', space=smem, size = 0x4, offset = 0x4, fixed_abs, tag = 'smem constant byte address 0x4 - core index']
  #allocation1 [shape = 'u32[144,128]{1,0:T(1,128)}', space=vmem, size = 0x12000, scoped, tag = 'internal scratch']
  %s0 = inlined_call_operand.hbm [shape: s32[2,8], index: 0, kind: input, shape index: {}]
  %s1 = inlined_call_operand.hbm [shape: bf16[128,128], index: 1, kind: input, shape index: {}]
  %s2 = inlined_call_operand.hbm [shape: bf16[128,1024], index: 2, kind: input, shape index: {}]
  %s3 = inlined_call_operand.vmem [shape: f32[1,256], index: 3, kind: input, shape index: {}]
  %s4 = inlined_call_operand.hbm [shape: bf16[256,128], index: 4, kind: input, shape index: {}]
  %s5 = inlined_call_operand.hbm [shape: f32[2,128], index: 5, kind: output, shape index: {}]
  %s6 = sld [smem:[#allocation0]]
  $region46: #{tpu_custom_call.1} parent=0
    _
  %s8 = ssub.s32 1, %s6
  %s9 = scalar_select 0, %s8, %s6
  $region1: #{tpu_custom_call.1} parent=0
    #allocation2 [shape = 'u8[1024]{0}', space=vmem, size = 0x400, scoped, tag = 'input window, operand 0, single buffered']
    #allocation3 [shape = 's32[1]{0}', space=sflag, size = 0x4, scoped, tag = 'scoped memory for tpu_custom_call.1']
    #allocation4 [shape = 's32[1]{0}', space=sflag, size = 0x4, scoped, tag = 'scoped memory for tpu_custom_call.1']
    #allocation5 [shape = 'u8[32768]{0}', space=vmem, size = 0x8000, scoped, tag = 'input window, operand 1, single buffered']
    #allocation6 [shape = 's32[1]{0}', space=sflag, size = 0x4, scoped, tag = 'scoped memory for tpu_custom_call.1']
    #allocation7 [shape = 'u8[262144]{0}', space=vmem, size = 0x40000, scoped, tag = 'input window, operand 2, single buffered']
    #allocation8 [shape = 'u8[65536]{0}', space=vmem, size = 0x10000, scoped, tag = 'input window, operand 4, single buffered']
    #allocation9 [shape = 's32[1]{0}', space=sflag, size = 0x4, scoped, tag = 'scoped memory for tpu_custom_call.1']
    #allocation10 [shape = 'u8[1024]{0}', space=vmem, size = 0x400, scoped, tag = 'output window, operand 0, single buffered']
    %10 = vsyncpa [#allocation3], 0
    %11 = vsyncpa [#allocation6], 0
    %12 = vsyncpa [#allocation9], 0
    %13 = vsyncpa [#allocation4], 0
    // Predicated region
    $region2: #{tpu_custom_call.1} parent=1 // pred_check
      _
    $region3: #{tpu_custom_call.1} parent=1 // pred_check_branch
      %15 = sbr.rel (0) target = $region5
    $region4: #{tpu_custom_call.1} parent=1 // pred_region
      %s17 = ssub.s32 32, 32
      %18 = vsyncadd [#allocation3], %s17
      %s20 = sshll.u32 [#allocation2], 4
      %s21 = int_to_ptr.vmem [resolvable:$true] %s20
      %23 = dma.hbm_to_vmem [thread:$0]  %s0, 32, %s21, [#allocation3]
    $region5: #{tpu_custom_call.1} parent=1 // pred_fallthru
      _
    // Predicated region
    $region6: #{tpu_custom_call.1} parent=1 // pred_check
      _
    $region7: #{tpu_custom_call.1} parent=1 // pred_check_branch
      %25 = sbr.rel (0) target = $region9
    $region8: #{tpu_custom_call.1} parent=1 // pred_region
      %s27 = ssub.s32 1024, 1024
      %28 = vsyncadd [#allocation6], %s27
      %s29 = sshll.u32 [#allocation5], 4
      %s30 = int_to_ptr.vmem [resolvable:$true] %s29
      %35 = dma.hbm_to_vmem [thread:$0]  %s1, 1024, %s30, [#allocation6], 64, 64, 4
    $region9: #{tpu_custom_call.1} parent=1 // pred_fallthru
      _
    // Predicated region
    $region10: #{tpu_custom_call.1} parent=1 // pred_check
      _
    $region11: #{tpu_custom_call.1} parent=1 // pred_check_branch
      %37 = sbr.rel (0) target = $region13
    $region12: #{tpu_custom_call.1} parent=1 // pred_region
      %s39 = ssub.s32 8192, 8192
      %40 = vsyncadd [#allocation6], %s39
      %s41 = sshll.u32 [#allocation7], 4
      %s42 = int_to_ptr.vmem [resolvable:$true] %s41
      %47 = dma.hbm_to_vmem [thread:$0]  %s2, 8192, %s42, [#allocation6], 512, 512, 32
    $region13: #{tpu_custom_call.1} parent=1 // pred_fallthru
      _
    // Predicated region
    $region14: #{tpu_custom_call.1} parent=1 // pred_check
      _
    $region15: #{tpu_custom_call.1} parent=1 // pred_check_branch
      %49 = sbr.rel (0) target = $region17
    $region16: #{tpu_custom_call.1} parent=1 // pred_region
      _
    $region17: #{tpu_custom_call.1} parent=1 // pred_fallthru
      _
    // Predicated region
    $region18: #{tpu_custom_call.1} parent=1 // pred_check
      _
    $region19: #{tpu_custom_call.1} parent=1 // pred_check_branch
      %51 = sbr.rel (0) target = $region21
    $region20: #{tpu_custom_call.1} parent=1 // pred_region
      %s53 = ssub.s32 2048, 2048
      %54 = vsyncadd [#allocation9], %s53
      %s55 = sshll.u32 [#allocation8], 4
      %s56 = int_to_ptr.vmem [resolvable:$true] %s55
      %61 = dma.hbm_to_vmem [thread:$0]  %s4, 2048, %s56, [#allocation9], 64, 64, 4
    $region21: #{tpu_custom_call.1} parent=1 // pred_fallthru
      _
    // Predicated region
    $region22: #{tpu_custom_call.1} parent=1 // pred_check
      _
    $region23: #{tpu_custom_call.1} parent=1 // pred_check_branch
      %63 = sbr.rel (0) target = $region25
    $region24: #{tpu_custom_call.1} parent=1 // pred_region
      %64 = dma.done [#allocation3], 32
    $region25: #{tpu_custom_call.1} parent=1 // pred_fallthru
      _
    // Predicated region
    $region26: #{tpu_custom_call.1} parent=1 // pred_check
      _
    $region27: #{tpu_custom_call.1} parent=1 // pred_check_branch
      %66 = sbr.rel (0) target = $region29
    $region28: #{tpu_custom_call.1} parent=1 // pred_region
      %67 = dma.done [#allocation6], 1024
    $region29: #{tpu_custom_call.1} parent=1 // pred_fallthru
      _
    // Predicated region
    $region30: #{tpu_custom_call.1} parent=1 // pred_check
      _
    $region31: #{tpu_custom_call.1} parent=1 // pred_check_branch
      %69 = sbr.rel (0) target = $region33
    $region32: #{tpu_custom_call.1} parent=1 // pred_region
      %70 = dma.done [#allocation6], 8192
    $region33: #{tpu_custom_call.1} parent=1 // pred_fallthru
      _
    // Predicated region
    $region34: #{tpu_custom_call.1} parent=1 // pred_check
      _
    $region35: #{tpu_custom_call.1} parent=1 // pred_check_branch
      %72 = sbr.rel (0) target = $region37
    $region36: #{tpu_custom_call.1} parent=1 // pred_region
      %73 = dma.done [#allocation9], 2048
    $region37: #{tpu_custom_call.1} parent=1 // pred_fallthru
      _
    %v75 = vld [vmem:[#allocation2] sm:$0x3]
    %v76 = vlaneseq
    %v77 = vshrl.u32 %v76, 7
    %v78 = vsub.s32 0, %v77
    %v79 = vrot.slane %v75, %v78
    %81 = vbcast.lane.b32.xlu0 %v79, 256
    %v82 = vpop.permute.xlu0 %81
    %v83 = vlaneseq
    %v84 = vshrl.u32 %v83, 7
    %v85 = vsub.s32 1, %v84
    %v86 = vrot.slane %v75, %v85
    %88 = vbcast.lane.b32.xlu0 %v86, 256
    %v89 = vpop.permute.xlu0 %88
    %v90 = vlaneseq
    %v91 = vand.u32 %v90, 127
    %vm92 = vcmp.eq.s32.totalorder %v82, %v91
    %vm93 = vcmp.eq.s32.totalorder %v89, %v91
    %v94 = vsel %vm92, 1, 0
    %v95 = vsel %vm93, 1, 0
    %v96 = vcvt.s32.f32 %v94
    %v97 = vcvt.s32.f32 %v95
    %v98 = vpack.c.bf16 %v96, %v96
    %v99 = vpack.c.bf16 %v97, %v97
    %v100 = vld [vmem:[#allocation5] sm:$0xf]
    %v101 = vld [vmem:[#allocation5 + $0x4] sm:$0xf]
    %v102 = vld [vmem:[#allocation5 + $0x8] sm:$0xf]
    %v103 = vld [vmem:[#allocation5 + $0xc] sm:$0xf]
    %v104 = vld [vmem:[#allocation5 + $0x10] sm:$0xf]
    %v105 = vld [vmem:[#allocation5 + $0x14] sm:$0xf]
    %v106 = vld [vmem:[#allocation5 + $0x18] sm:$0xf]
    %v107 = vld [vmem:[#allocation5 + $0x1c] sm:$0xf]
    %v108 = vld [vmem:[#allocation5 + $0x20] sm:$0xf]
    %v109 = vld [vmem:[#allocation5 + $0x24] sm:$0xf]
    %v110 = vld [vmem:[#allocation5 + $0x28] sm:$0xf]
    %v111 = vld [vmem:[#allocation5 + $0x2c] sm:$0xf]
    %v112 = vld [vmem:[#allocation5 + $0x30] sm:$0xf]
    %v113 = vld [vmem:[#allocation5 + $0x34] sm:$0xf]
    %v114 = vld [vmem:[#allocation5 + $0x38] sm:$0xf]
    %v115 = vld [vmem:[#allocation5 + $0x3c] sm:$0xf]
    %v118 = vunpack.c.l.b16 %v98
    %v119 = vunpack.c.l.b16 %v99
    %v120 = vpack.c.b16 %v119, %v118
    %v138 = vunpack.c.l.b16 %v100
    %v139 = vunpack.c.l.b16 %v101
    %v140 = vunpack.c.l.b16 %v102
    %v141 = vunpack.c.l.b16 %v103
    %v142 = vunpack.c.l.b16 %v104
    %v143 = vunpack.c.l.b16 %v105
    %v144 = vunpack.c.l.b16 %v106
    %v145 = vunpack.c.l.b16 %v107
    %v146 = vunpack.c.l.b16 %v108
    %v147 = vunpack.c.l.b16 %v109
    %v148 = vunpack.c.l.b16 %v110
    %v149 = vunpack.c.l.b16 %v111
    %v150 = vunpack.c.l.b16 %v112
    %v151 = vunpack.c.l.b16 %v113
    %v152 = vunpack.c.l.b16 %v114
    %v153 = vunpack.c.l.b16 %v115
    %v154 = vpack.c.b16 %v139, %v138
    %v155 = vpack.c.b16 %v141, %v140
    %v156 = vpack.c.b16 %v143, %v142
    %v157 = vpack.c.b16 %v145, %v144
    %v158 = vpack.c.b16 %v147, %v146
    %v159 = vpack.c.b16 %v149, %v148
    %v160 = vpack.c.b16 %v151, %v150
    %v161 = vpack.c.b16 %v153, %v152
    %170 = vmatprep.subr.bf16.mxu0 0
    %171 = vmatpush1.bf16.msra.mxu0 %v154
    %172 = vmatprep.subr.bf16.mxu0 0
    %173 = vmatpush1.bf16.msra.mxu0 %v155
    %174 = vmatprep.subr.bf16.mxu0 0
    %175 = vmatpush1.bf16.msra.mxu0 %v156
    %176 = vmatprep.subr.bf16.mxu0 0
    %177 = vmatpush1.bf16.msra.mxu0 %v157
    %178 = vmatprep.subr.bf16.mxu0 0
    %179 = vmatpush1.bf16.msra.mxu0 %v158
    %180 = vmatprep.subr.bf16.mxu0 0
    %181 = vmatpush1.bf16.msra.mxu0 %v159
    %182 = vmatprep.subr.bf16.mxu0 0
    %183 = vmatpush1.bf16.msra.mxu0 %v160
    %184 = vmatprep.subr.bf16.mxu0 0
    %185 = vmatpush1.bf16.msra.mxu0 %v161
    %186 = vmatprep.subr.bf16.mxu0 0
    %187 = vmatpush1.bf16.msra.mxu0 0
    %188 = vmatprep.subr.bf16.mxu0 0
    %189 = vmatpush1.bf16.msra.mxu0 0
    %190 = vmatprep.subr.bf16.mxu0 0
    %191 = vmatpush1.bf16.msra.mxu0 0
    %192 = vmatprep.subr.bf16.mxu0 0
    %193 = vmatpush1.bf16.msra.mxu0 0
    %194 = vmatprep.subr.bf16.mxu0 0
    %195 = vmatpush1.bf16.msra.mxu0 0
    %196 = vmatprep.subr.bf16.mxu0 0
    %197 = vmatpush1.bf16.msra.mxu0 0
    %198 = vmatprep.subr.bf16.mxu0 0
    %199 = vmatpush1.bf16.msra.mxu0 0
    %200 = vmatprep.subr.bf16.mxu0 0
    %201 = vmatpush1.bf16.msra.mxu0 0
    %202 = vmatprep.mubr.bf16.mxu0 0
    %203 = vmatmul.mubr.bf16.gmra.mrb[0].mxu0 %v120
    %v204 = vpop.f32.mrb[0].mxu0
    %v205 = vadd.f32 0.0, %v204
    %v206 = vpop.f32.mrb[0].mxu0
    %v207 = vpop.f32.mrb[0].mxu0
    %v208 = vadd.f32 0.0, %v207
    %v209 = vpop.f32.mrb[0].mxu0
    %210 = vdwg.mxu0
    %v211 = vpack.c.bf16 %v208, %v205
    %v212 = vld [vmem:[#allocation7] sm:$0xff]
    %v213 = vld [vmem:[#allocation7 + $0x8] sm:$0xff]
    %v214 = vld [vmem:[#allocation7 + $0x10] sm:$0xff]
    %v215 = vld [vmem:[#allocation7 + $0x18] sm:$0xff]
    %v216 = vld [vmem:[#allocation7 + $0x20] sm:$0xff]
    %v217 = vld [vmem:[#allocation7 + $0x28] sm:$0xff]
    %v218 = vld [vmem:[#allocation7 + $0x30] sm:$0xff]
    %v219 = vld [vmem:[#allocation7 + $0x38] sm:$0xff]
    %v220 = vld [vmem:[#allocation7 + $0x40] sm:$0xff]
    %v221 = vld [vmem:[#allocation7 + $0x48] sm:$0xff]
    %v222 = vld [vmem:[#allocation7 + $0x50] sm:$0xff]
    %v223 = vld [vmem:[#allocation7 + $0x58] sm:$0xff]
    %v224 = vld [vmem:[#allocation7 + $0x60] sm:$0xff]
    %v225 = vld [vmem:[#allocation7 + $0x68] sm:$0xff]
    %v226 = vld [vmem:[#allocation7 + $0x70] sm:$0xff]
    %v227 = vld [vmem:[#allocation7 + $0x78] sm:$0xff]
    %v228 = vld [vmem:[#allocation7 + $0x80] sm:$0xff]
    %v229 = vld [vmem:[#allocation7 + $0x88] sm:$0xff]
    %v230 = vld [vmem:[#allocation7 + $0x90] sm:$0xff]
    %v231 = vld [vmem:[#allocation7 + $0x98] sm:$0xff]
    %v232 = vld [vmem:[#allocation7 + $0xa0] sm:$0xff]
    %v233 = vld [vmem:[#allocation7 + $0xa8] sm:$0xff]
    %v234 = vld [vmem:[#allocation7 + $0xb0] sm:$0xff]
    %v235 = vld [vmem:[#allocation7 + $0xb8] sm:$0xff]
    %v236 = vld [vmem:[#allocation7 + $0xc0] sm:$0xff]
    %v237 = vld [vmem:[#allocation7 + $0xc8] sm:$0xff]
    %v238 = vld [vmem:[#allocation7 + $0xd0] sm:$0xff]
    %v239 = vld [vmem:[#allocation7 + $0xd8] sm:$0xff]
    %v240 = vld [vmem:[#allocation7 + $0xe0] sm:$0xff]
    %v241 = vld [vmem:[#allocation7 + $0xe8] sm:$0xff]
    %v242 = vld [vmem:[#allocation7 + $0xf0] sm:$0xff]
    %v243 = vld [vmem:[#allocation7 + $0xf8] sm:$0xff]
    %v244 = vld [vmem:[#allocation7 + $0x100] sm:$0xff]
    %v245 = vld [vmem:[#allocation7 + $0x108] sm:$0xff]
    %v246 = vld [vmem:[#allocation7 + $0x110] sm:$0xff]
    %v247 = vld [vmem:[#allocation7 + $0x118] sm:$0xff]
    %v248 = vld [vmem:[#allocation7 + $0x120] sm:$0xff]
    %v249 = vld [vmem:[#allocation7 + $0x128] sm:$0xff]
    %v250 = vld [vmem:[#allocation7 + $0x130] sm:$0xff]
    %v251 = vld [vmem:[#allocation7 + $0x138] sm:$0xff]
    %v252 = vld [vmem:[#allocation7 + $0x140] sm:$0xff]
    %v253 = vld [vmem:[#allocation7 + $0x148] sm:$0xff]
    %v254 = vld [vmem:[#allocation7 + $0x150] sm:$0xff]
    %v255 = vld [vmem:[#allocation7 + $0x158] sm:$0xff]
    %v256 = vld [vmem:[#allocation7 + $0x160] sm:$0xff]
    %v257 = vld [vmem:[#allocation7 + $0x168] sm:$0xff]
    %v258 = vld [vmem:[#allocation7 + $0x170] sm:$0xff]
    %v259 = vld [vmem:[#allocation7 + $0x178] sm:$0xff]
    %v260 = vld [vmem:[#allocation7 + $0x180] sm:$0xff]
    %v261 = vld [vmem:[#allocation7 + $0x188] sm:$0xff]
    %v262 = vld [vmem:[#allocation7 + $0x190] sm:$0xff]
    %v263 = vld [vmem:[#allocation7 + $0x198] sm:$0xff]
    %v264 = vld [vmem:[#allocation7 + $0x1a0] sm:$0xff]
    %v265 = vld [vmem:[#allocation7 + $0x1a8] sm:$0xff]
    %v266 = vld [vmem:[#allocation7 + $0x1b0] sm:$0xff]
    %v267 = vld [vmem:[#allocation7 + $0x1b8] sm:$0xff]
    %v268 = vld [vmem:[#allocation7 + $0x1c0] sm:$0xff]
    %v269 = vld [vmem:[#allocation7 + $0x1c8] sm:$0xff]
    %v270 = vld [vmem:[#allocation7 + $0x1d0] sm:$0xff]
    %v271 = vld [vmem:[#allocation7 + $0x1d8] sm:$0xff]
    %v272 = vld [vmem:[#allocation7 + $0x1e0] sm:$0xff]
    %v273 = vld [vmem:[#allocation7 + $0x1e8] sm:$0xff]
    %v274 = vld [vmem:[#allocation7 + $0x1f0] sm:$0xff]
    %v275 = vld [vmem:[#allocation7 + $0x1f8] sm:$0xff]
    %v340 = vunpack.c.l.b16 %v212
    %v341 = vunpack.c.h.b16 %v212
    %v342 = vunpack.c.l.b16 %v213
    %v343 = vunpack.c.h.b16 %v213
    %v344 = vunpack.c.l.b16 %v214
    %v345 = vunpack.c.h.b16 %v214
    %v346 = vunpack.c.l.b16 %v215
    %v347 = vunpack.c.h.b16 %v215
    %v348 = vunpack.c.l.b16 %v216
    %v349 = vunpack.c.h.b16 %v216
    %v350 = vunpack.c.l.b16 %v217
    %v351 = vunpack.c.h.b16 %v217
    %v352 = vunpack.c.l.b16 %v218
    %v353 = vunpack.c.h.b16 %v218
    %v354 = vunpack.c.l.b16 %v219
    %v355 = vunpack.c.h.b16 %v219
    %v356 = vunpack.c.l.b16 %v220
    %v357 = vunpack.c.h.b16 %v220
    %v358 = vunpack.c.l.b16 %v221
    %v359 = vunpack.c.h.b16 %v221
    %v360 = vunpack.c.l.b16 %v222
    %v361 = vunpack.c.h.b16 %v222
    %v362 = vunpack.c.l.b16 %v223
    %v363 = vunpack.c.h.b16 %v223
    %v364 = vunpack.c.l.b16 %v224
    %v365 = vunpack.c.h.b16 %v224
    %v366 = vunpack.c.l.b16 %v225
    %v367 = vunpack.c.h.b16 %v225
    %v368 = vunpack.c.l.b16 %v226
    %v369 = vunpack.c.h.b16 %v226
    %v370 = vunpack.c.l.b16 %v227
    %v371 = vunpack.c.h.b16 %v227
    %v372 = vunpack.c.l.b16 %v228
    %v373 = vunpack.c.h.b16 %v228
    %v374 = vunpack.c.l.b16 %v229
    %v375 = vunpack.c.h.b16 %v229
    %v376 = vunpack.c.l.b16 %v230
    %v377 = vunpack.c.h.b16 %v230
    %v378 = vunpack.c.l.b16 %v231
    %v379 = vunpack.c.h.b16 %v231
    %v380 = vunpack.c.l.b16 %v232
    %v381 = vunpack.c.h.b16 %v232
    %v382 = vunpack.c.l.b16 %v233
    %v383 = vunpack.c.h.b16 %v233
    %v384 = vunpack.c.l.b16 %v234
    %v385 = vunpack.c.h.b16 %v234
    %v386 = vunpack.c.l.b16 %v235
    %v387 = vunpack.c.h.b16 %v235
    %v388 = vunpack.c.l.b16 %v236
    %v389 = vunpack.c.h.b16 %v236
    %v390 = vunpack.c.l.b16 %v237
    %v391 = vunpack.c.h.b16 %v237
    %v392 = vunpack.c.l.b16 %v238
    %v393 = vunpack.c.h.b16 %v238
    %v394 = vunpack.c.l.b16 %v239
    %v395 = vunpack.c.h.b16 %v239
    %v396 = vunpack.c.l.b16 %v240
    %v397 = vunpack.c.h.b16 %v240
    %v398 = vunpack.c.l.b16 %v241
    %v399 = vunpack.c.h.b16 %v241
    %v400 = vunpack.c.l.b16 %v242
    %v401 = vunpack.c.h.b16 %v242
    %v402 = vunpack.c.l.b16 %v243
    %v403 = vunpack.c.h.b16 %v243
    %v404 = vunpack.c.l.b16 %v244
    %v405 = vunpack.c.h.b16 %v244
    %v406 = vunpack.c.l.b16 %v245
    %v407 = vunpack.c.h.b16 %v245
    %v408 = vunpack.c.l.b16 %v246
    %v409 = vunpack.c.h.b16 %v246
    %v410 = vunpack.c.l.b16 %v247
    %v411 = vunpack.c.h.b16 %v247
    %v412 = vunpack.c.l.b16 %v248
    %v413 = vunpack.c.h.b16 %v248
    %v414 = vunpack.c.l.b16 %v249
    %v415 = vunpack.c.h.b16 %v249
    %v416 = vunpack.c.l.b16 %v250
    %v417 = vunpack.c.h.b16 %v250
    %v418 = vunpack.c.l.b16 %v251
    %v419 = vunpack.c.h.b16 %v251
    %v420 = vunpack.c.l.b16 %v252
    %v421 = vunpack.c.h.b16 %v252
    %v422 = vunpack.c.l.b16 %v253
    %v423 = vunpack.c.h.b16 %v253
    %v424 = vunpack.c.l.b16 %v254
    %v425 = vunpack.c.h.b16 %v254
    %v426 = vunpack.c.l.b16 %v255
    %v427 = vunpack.c.h.b16 %v255
    %v428 = vunpack.c.l.b16 %v256
    %v429 = vunpack.c.h.b16 %v256
    %v430 = vunpack.c.l.b16 %v257
    %v431 = vunpack.c.h.b16 %v257
    %v432 = vunpack.c.l.b16 %v258
    %v433 = vunpack.c.h.b16 %v258
    %v434 = vunpack.c.l.b16 %v259
    %v435 = vunpack.c.h.b16 %v259
    %v436 = vunpack.c.l.b16 %v260
    %v437 = vunpack.c.h.b16 %v260
    %v438 = vunpack.c.l.b16 %v261
    %v439 = vunpack.c.h.b16 %v261
    %v440 = vunpack.c.l.b16 %v262
    %v441 = vunpack.c.h.b16 %v262
    %v442 = vunpack.c.l.b16 %v263
    %v443 = vunpack.c.h.b16 %v263
    %v444 = vunpack.c.l.b16 %v264
    %v445 = vunpack.c.h.b16 %v264
    %v446 = vunpack.c.l.b16 %v265
    %v447 = vunpack.c.h.b16 %v265
    %v448 = vunpack.c.l.b16 %v266
    %v449 = vunpack.c.h.b16 %v266
    %v450 = vunpack.c.l.b16 %v267
    %v451 = vunpack.c.h.b16 %v267
    %v452 = vunpack.c.l.b16 %v268
    %v453 = vunpack.c.h.b16 %v268
    %v454 = vunpack.c.l.b16 %v269
    %v455 = vunpack.c.h.b16 %v269
    %v456 = vunpack.c.l.b16 %v270
    %v457 = vunpack.c.h.b16 %v270
    %v458 = vunpack.c.l.b16 %v271
    %v459 = vunpack.c.h.b16 %v271
    %v460 = vunpack.c.l.b16 %v272
    %v461 = vunpack.c.h.b16 %v272
    %v462 = vunpack.c.l.b16 %v273
    %v463 = vunpack.c.h.b16 %v273
    %v464 = vunpack.c.l.b16 %v274
    %v465 = vunpack.c.h.b16 %v274
    %v466 = vunpack.c.l.b16 %v275
    %v467 = vunpack.c.h.b16 %v275
    %v468 = vpack.c.b16 %v348, %v340
    %v469 = vpack.c.b16 %v349, %v341
    %v470 = vpack.c.b16 %v350, %v342
    %v471 = vpack.c.b16 %v351, %v343
    %v472 = vpack.c.b16 %v352, %v344
    %v473 = vpack.c.b16 %v353, %v345
    %v474 = vpack.c.b16 %v354, %v346
    %v475 = vpack.c.b16 %v355, %v347
    %v476 = vpack.c.b16 %v364, %v356
    %v477 = vpack.c.b16 %v365, %v357
    %v478 = vpack.c.b16 %v366, %v358
    %v479 = vpack.c.b16 %v367, %v359
    %v480 = vpack.c.b16 %v368, %v360
    %v481 = vpack.c.b16 %v369, %v361
    %v482 = vpack.c.b16 %v370, %v362
    %v483 = vpack.c.b16 %v371, %v363
    %v484 = vpack.c.b16 %v380, %v372
    %v485 = vpack.c.b16 %v381, %v373
    %v486 = vpack.c.b16 %v382, %v374
    %v487 = vpack.c.b16 %v383, %v375
    %v488 = vpack.c.b16 %v384, %v376
    %v489 = vpack.c.b16 %v385, %v377
    %v490 = vpack.c.b16 %v386, %v378
    %v491 = vpack.c.b16 %v387, %v379
    %v492 = vpack.c.b16 %v396, %v388
    %v493 = vpack.c.b16 %v397, %v389
    %v494 = vpack.c.b16 %v398, %v390
    %v495 = vpack.c.b16 %v399, %v391
    %v496 = vpack.c.b16 %v400, %v392
    %v497 = vpack.c.b16 %v401, %v393
    %v498 = vpack.c.b16 %v402, %v394
    %v499 = vpack.c.b16 %v403, %v395
    %v500 = vpack.c.b16 %v412, %v404
    %v501 = vpack.c.b16 %v413, %v405
    %v502 = vpack.c.b16 %v414, %v406
    %v503 = vpack.c.b16 %v415, %v407
    %v504 = vpack.c.b16 %v416, %v408
    %v505 = vpack.c.b16 %v417, %v409
    %v506 = vpack.c.b16 %v418, %v410
    %v507 = vpack.c.b16 %v419, %v411
    %v508 = vpack.c.b16 %v428, %v420
    %v509 = vpack.c.b16 %v429, %v421
    %v510 = vpack.c.b16 %v430, %v422
    %v511 = vpack.c.b16 %v431, %v423
    %v512 = vpack.c.b16 %v432, %v424
    %v513 = vpack.c.b16 %v433, %v425
    %v514 = vpack.c.b16 %v434, %v426
    %v515 = vpack.c.b16 %v435, %v427
    %v516 = vpack.c.b16 %v444, %v436
    %v517 = vpack.c.b16 %v445, %v437
    %v518 = vpack.c.b16 %v446, %v438
    %v519 = vpack.c.b16 %v447, %v439
    %v520 = vpack.c.b16 %v448, %v440
    %v521 = vpack.c.b16 %v449, %v441
    %v522 = vpack.c.b16 %v450, %v442
    %v523 = vpack.c.b16 %v451, %v443
    %v524 = vpack.c.b16 %v460, %v452
    %v525 = vpack.c.b16 %v461, %v453
    %v526 = vpack.c.b16 %v462, %v454
    %v527 = vpack.c.b16 %v463, %v455
    %v528 = vpack.c.b16 %v464, %v456
    %v529 = vpack.c.b16 %v465, %v457
    %v530 = vpack.c.b16 %v466, %v458
    %v531 = vpack.c.b16 %v467, %v459
    %596 = vmatprep.subr.bf16.mxu0 %v469
    %597 = vmatpush1.bf16.msra.mxu0 %v468
    %598 = vmatprep.subr.bf16.mxu0 %v477
    %599 = vmatpush1.bf16.msra.mxu0 %v476
    %600 = vmatprep.subr.bf16.mxu0 %v485
    %601 = vmatpush1.bf16.msra.mxu0 %v484
    %602 = vmatprep.subr.bf16.mxu0 %v493
    %603 = vmatpush1.bf16.msra.mxu0 %v492
    %604 = vmatprep.subr.bf16.mxu0 %v501
    %605 = vmatpush1.bf16.msra.mxu0 %v500
    %606 = vmatprep.subr.bf16.mxu0 %v509
    %607 = vmatpush1.bf16.msra.mxu0 %v508
    %608 = vmatprep.subr.bf16.mxu0 %v517
    %609 = vmatpush1.bf16.msra.mxu0 %v516
    %610 = vmatprep.subr.bf16.mxu0 %v525
    %611 = vmatpush1.bf16.msra.mxu0 %v524
    %612 = vmatprep.subr.bf16.mxu0 0
    %613 = vmatpush1.bf16.msra.mxu0 0
    %614 = vmatprep.subr.bf16.mxu0 0
    %615 = vmatpush1.bf16.msra.mxu0 0
    %616 = vmatprep.subr.bf16.mxu0 0
    %617 = vmatpush1.bf16.msra.mxu0 0
    %618 = vmatprep.subr.bf16.mxu0 0
    %619 = vmatpush1.bf16.msra.mxu0 0
    %620 = vmatprep.subr.bf16.mxu0 0
    %621 = vmatpush1.bf16.msra.mxu0 0
    %622 = vmatprep.subr.bf16.mxu0 0
    %623 = vmatpush1.bf16.msra.mxu0 0
    %624 = vmatprep.subr.bf16.mxu0 0
    %625 = vmatpush1.bf16.msra.mxu0 0
    %626 = vmatprep.subr.bf16.mxu0 0
    %627 = vmatpush1.bf16.msra.mxu0 0
    %628 = vmatprep.mubr.bf16.mxu0 0
    %629 = vmatmul.mubr.bf16.gmra.mrb[0].mxu0 %v211
    %v630 = vpop.f32.mrb[0].mxu0
    %v631 = vadd.f32 0.0, %v630
    %v632 = vpop.f32.mrb[0].mxu0
    %v633 = vadd.f32 0.0, %v632
    %v634 = vpop.f32.mrb[0].mxu0
    %v635 = vadd.f32 0.0, %v634
    %v636 = vpop.f32.mrb[0].mxu0
    %v637 = vadd.f32 0.0, %v636
    %638 = vdwg.mxu0
    %639 = vmatprep.subr.bf16.mxu0 %v471
    %640 = vmatpush1.bf16.msra.mxu0 %v470
    %641 = vmatprep.subr.bf16.mxu0 %v479
    %642 = vmatpush1.bf16.msra.mxu0 %v478
    %643 = vmatprep.subr.bf16.mxu0 %v487
    %644 = vmatpush1.bf16.msra.mxu0 %v486
    %645 = vmatprep.subr.bf16.mxu0 %v495
    %646 = vmatpush1.bf16.msra.mxu0 %v494
    %647 = vmatprep.subr.bf16.mxu0 %v503
    %648 = vmatpush1.bf16.msra.mxu0 %v502
    %649 = vmatprep.subr.bf16.mxu0 %v511
    %650 = vmatpush1.bf16.msra.mxu0 %v510
    %651 = vmatprep.subr.bf16.mxu0 %v519
    %652 = vmatpush1.bf16.msra.mxu0 %v518
    %653 = vmatprep.subr.bf16.mxu0 %v527
    %654 = vmatpush1.bf16.msra.mxu0 %v526
    %655 = vmatprep.subr.bf16.mxu0 0
    %656 = vmatpush1.bf16.msra.mxu0 0
    %657 = vmatprep.subr.bf16.mxu0 0
    %658 = vmatpush1.bf16.msra.mxu0 0
    %659 = vmatprep.subr.bf16.mxu0 0
    %660 = vmatpush1.bf16.msra.mxu0 0
    %661 = vmatprep.subr.bf16.mxu0 0
    %662 = vmatpush1.bf16.msra.mxu0 0
    %663 = vmatprep.subr.bf16.mxu0 0
    %664 = vmatpush1.bf16.msra.mxu0 0
    %665 = vmatprep.subr.bf16.mxu0 0
    %666 = vmatpush1.bf16.msra.mxu0 0
    %667 = vmatprep.subr.bf16.mxu0 0
    %668 = vmatpush1.bf16.msra.mxu0 0
    %669 = vmatprep.subr.bf16.mxu0 0
    %670 = vmatpush1.bf16.msra.mxu0 0
    %671 = vmatprep.mubr.bf16.mxu0 0
    %672 = vmatmul.mubr.bf16.gmra.mrb[0].mxu0 %v211
    %v673 = vpop.f32.mrb[0].mxu0
    %v674 = vadd.f32 0.0, %v673
    %v675 = vpop.f32.mrb[0].mxu0
    %v676 = vadd.f32 0.0, %v675
    %v677 = vpop.f32.mrb[0].mxu0
    %v678 = vadd.f32 0.0, %v677
    %v679 = vpop.f32.mrb[0].mxu0
    %v680 = vadd.f32 0.0, %v679
    %681 = vdwg.mxu0
    %682 = vmatprep.subr.bf16.mxu0 %v473
    %683 = vmatpush1.bf16.msra.mxu0 %v472
    %684 = vmatprep.subr.bf16.mxu0 %v481
    %685 = vmatpush1.bf16.msra.mxu0 %v480
    %686 = vmatprep.subr.bf16.mxu0 %v489
    %687 = vmatpush1.bf16.msra.mxu0 %v488
    %688 = vmatprep.subr.bf16.mxu0 %v497
    %689 = vmatpush1.bf16.msra.mxu0 %v496
    %690 = vmatprep.subr.bf16.mxu0 %v505
    %691 = vmatpush1.bf16.msra.mxu0 %v504
    %692 = vmatprep.subr.bf16.mxu0 %v513
    %693 = vmatpush1.bf16.msra.mxu0 %v512
    %694 = vmatprep.subr.bf16.mxu0 %v521
    %695 = vmatpush1.bf16.msra.mxu0 %v520
    %696 = vmatprep.subr.bf16.mxu0 %v529
    %697 = vmatpush1.bf16.msra.mxu0 %v528
    %698 = vmatprep.subr.bf16.mxu0 0
    %699 = vmatpush1.bf16.msra.mxu0 0
    %700 = vmatprep.subr.bf16.mxu0 0
    %701 = vmatpush1.bf16.msra.mxu0 0
    %702 = vmatprep.subr.bf16.mxu0 0
    %703 = vmatpush1.bf16.msra.mxu0 0
    %704 = vmatprep.subr.bf16.mxu0 0
    %705 = vmatpush1.bf16.msra.mxu0 0
    %706 = vmatprep.subr.bf16.mxu0 0
    %707 = vmatpush1.bf16.msra.mxu0 0
    %708 = vmatprep.subr.bf16.mxu0 0
    %709 = vmatpush1.bf16.msra.mxu0 0
    %710 = vmatprep.subr.bf16.mxu0 0
    %711 = vmatpush1.bf16.msra.mxu0 0
    %712 = vmatprep.subr.bf16.mxu0 0
    %713 = vmatpush1.bf16.msra.mxu0 0
    %714 = vmatprep.mubr.bf16.mxu0 0
    %715 = vmatmul.mubr.bf16.gmra.mrb[0].mxu0 %v211
    %v716 = vpop.f32.mrb[0].mxu0
    %v717 = vadd.f32 0.0, %v716
    %v718 = vpop.f32.mrb[0].mxu0
    %v719 = vadd.f32 0.0, %v718
    %v720 = vpop.f32.mrb[0].mxu0
    %v721 = vadd.f32 0.0, %v720
    %v722 = vpop.f32.mrb[0].mxu0
    %v723 = vadd.f32 0.0, %v722
    %724 = vdwg.mxu0
    %725 = vmatprep.subr.bf16.mxu0 %v475
    %726 = vmatpush1.bf16.msra.mxu0 %v474
    %727 = vmatprep.subr.bf16.mxu0 %v483
    %728 = vmatpush1.bf16.msra.mxu0 %v482
    %729 = vmatprep.subr.bf16.mxu0 %v491
    %730 = vmatpush1.bf16.msra.mxu0 %v490
    %731 = vmatprep.subr.bf16.mxu0 %v499
    %732 = vmatpush1.bf16.msra.mxu0 %v498
    %733 = vmatprep.subr.bf16.mxu0 %v507
    %734 = vmatpush1.bf16.msra.mxu0 %v506
    %735 = vmatprep.subr.bf16.mxu0 %v515
    %736 = vmatpush1.bf16.msra.mxu0 %v514
    %737 = vmatprep.subr.bf16.mxu0 %v523
    %738 = vmatpush1.bf16.msra.mxu0 %v522
    %739 = vmatprep.subr.bf16.mxu0 %v531
    %740 = vmatpush1.bf16.msra.mxu0 %v530
    %741 = vmatprep.subr.bf16.mxu0 0
    %742 = vmatpush1.bf16.msra.mxu0 0
    %743 = vmatprep.subr.bf16.mxu0 0
    %744 = vmatpush1.bf16.msra.mxu0 0
    %745 = vmatprep.subr.bf16.mxu0 0
    %746 = vmatpush1.bf16.msra.mxu0 0
    %747 = vmatprep.subr.bf16.mxu0 0
    %748 = vmatpush1.bf16.msra.mxu0 0
    %749 = vmatprep.subr.bf16.mxu0 0
    %750 = vmatpush1.bf16.msra.mxu0 0
    %751 = vmatprep.subr.bf16.mxu0 0
    %752 = vmatpush1.bf16.msra.mxu0 0
    %753 = vmatprep.subr.bf16.mxu0 0
    %754 = vmatpush1.bf16.msra.mxu0 0
    %755 = vmatprep.subr.bf16.mxu0 0
    %756 = vmatpush1.bf16.msra.mxu0 0
    %757 = vmatprep.mubr.bf16.mxu0 0
    %758 = vmatmul.mubr.bf16.gmra.mrb[0].mxu0 %v211
    %v759 = vpop.f32.mrb[0].mxu0
    %v760 = vadd.f32 0.0, %v759
    %v761 = vpop.f32.mrb[0].mxu0
    %v762 = vadd.f32 0.0, %v761
    %v763 = vpop.f32.mrb[0].mxu0
    %v764 = vadd.f32 0.0, %v763
    %v765 = vpop.f32.mrb[0].mxu0
    %v766 = vadd.f32 0.0, %v765
    %767 = vdwg.mxu0
    %v770 = vrot.slane %v633, 1
    %v771 = vrot.slane %v637, 1
    %v774 = vadd.f32 %v631, %v770
    %v775 = vadd.f32 %v635, %v771
    %v778 = vrot.slane %v674, 2
    %v779 = vrot.slane %v678, 2
    %v782 = vadd.f32 %v774, %v778
    %v783 = vadd.f32 %v775, %v779
    %vm784 = vcmask 1045504
    %v785 = vsel %vm784, %v782, -inf
    %v786 = vrot.slane %v785, 4
    %v787 = vmax.f32 %v785, %v786
    %v788 = vrot.slane %v787, 2
    %v789 = vmax.f32 %v787, %v788
    %v790 = vrot.slane %v789, 1
    %v791 = vmax.f32 %v789, %v790
    %v792 = vsel %vm784, %v783, -inf
    %v793 = vrot.slane %v792, 4
    %v794 = vmax.f32 %v792, %v793
    %v795 = vrot.slane %v794, 2
    %v796 = vmax.f32 %v794, %v795
    %v797 = vrot.slane %v796, 1
    %v798 = vmax.f32 %v796, %v797
    %v801 = vrot.slane %v717, 1
    %v802 = vrot.slane %v721, 1
    %v805 = vadd.f32 %v676, %v801
    %v806 = vadd.f32 %v680, %v802
    %v809 = vrot.slane %v719, 2
    %v810 = vrot.slane %v723, 2
    %v813 = vadd.f32 %v805, %v809
    %v814 = vadd.f32 %v806, %v810
    %v817 = vrot.slane %v760, 3
    %v818 = vrot.slane %v764, 3
    %v821 = vadd.f32 %v813, %v817
    %v822 = vadd.f32 %v814, %v818
    %v825 = vrot.slane %v762, 4
    %v826 = vrot.slane %v766, 4
    %v829 = vadd.f32 %v821, %v825
    %v830 = vadd.f32 %v822, %v826
    %vm831 = vcmask 1043456
    %v832 = vsel %vm831, %v829, -inf
    %v833 = vrot.slane %v832, 4
    %v834 = vmax.f32 %v832, %v833
    %v835 = vrot.slane %v834, 2
    %v836 = vmax.f32 %v834, %v835
    %v837 = vrot.slane %v836, 1
    %v838 = vmax.f32 %v836, %v837
    %v839 = vsel %vm831, %v830, -inf
    %v840 = vrot.slane %v839, 4
    %v841 = vmax.f32 %v839, %v840
    %v842 = vrot.slane %v841, 2
    %v843 = vmax.f32 %v841, %v842
    %v844 = vrot.slane %v843, 1
    %v845 = vmax.f32 %v843, %v844
    %vm848 = vcmask 1041409
    %v849 = vsel %vm848, %v798, %v791
    %v853 = vsel %vm848, %v845, %v838
    %v855 = vld [vmem:[%s3] sm:$0x3]
    %v857 = vlaneseq
    %v858 = vshrl.u32 %v857, 7
    %v859 = vsub.s32 0, %v858
    %v860 = vrot.slane %v855, %v859
    %v861 = vlaneseq
    %v862 = vshrl.u32 %v861, 7
    %v863 = vsub.s32 1, %v862
    %v864 = vrot.slane %v855, %v863
    %v867 = vadd.f32 %v849, %v860
    %v868 = vadd.f32 %v853, %v864
    %v869 = vpack.c.bf16 %v867, %v867
    %v870 = vpack.c.bf16 %v868, %v868
    %v871 = vld [vmem:[#allocation8] sm:$0xf]
    %v872 = vld [vmem:[#allocation8 + $0x4] sm:$0xf]
    %v873 = vld [vmem:[#allocation8 + $0x8] sm:$0xf]
    %v874 = vld [vmem:[#allocation8 + $0xc] sm:$0xf]
    %v875 = vld [vmem:[#allocation8 + $0x10] sm:$0xf]
    %v876 = vld [vmem:[#allocation8 + $0x14] sm:$0xf]
    %v877 = vld [vmem:[#allocation8 + $0x18] sm:$0xf]
    %v878 = vld [vmem:[#allocation8 + $0x1c] sm:$0xf]
    %v879 = vld [vmem:[#allocation8 + $0x20] sm:$0xf]
    %v880 = vld [vmem:[#allocation8 + $0x24] sm:$0xf]
    %v881 = vld [vmem:[#allocation8 + $0x28] sm:$0xf]
    %v882 = vld [vmem:[#allocation8 + $0x2c] sm:$0xf]
    %v883 = vld [vmem:[#allocation8 + $0x30] sm:$0xf]
    %v884 = vld [vmem:[#allocation8 + $0x34] sm:$0xf]
    %v885 = vld [vmem:[#allocation8 + $0x38] sm:$0xf]
    %v886 = vld [vmem:[#allocation8 + $0x3c] sm:$0xf]
    %v887 = vld [vmem:[#allocation8 + $0x40] sm:$0xf]
    %v888 = vld [vmem:[#allocation8 + $0x44] sm:$0xf]
    %v889 = vld [vmem:[#allocation8 + $0x48] sm:$0xf]
    %v890 = vld [vmem:[#allocation8 + $0x4c] sm:$0xf]
    %v891 = vld [vmem:[#allocation8 + $0x50] sm:$0xf]
    %v892 = vld [vmem:[#allocation8 + $0x54] sm:$0xf]
    %v893 = vld [vmem:[#allocation8 + $0x58] sm:$0xf]
    %v894 = vld [vmem:[#allocation8 + $0x5c] sm:$0xf]
    %v895 = vld [vmem:[#allocation8 + $0x60] sm:$0xf]
    %v896 = vld [vmem:[#allocation8 + $0x64] sm:$0xf]
    %v897 = vld [vmem:[#allocation8 + $0x68] sm:$0xf]
    %v898 = vld [vmem:[#allocation8 + $0x6c] sm:$0xf]
    %v899 = vld [vmem:[#allocation8 + $0x70] sm:$0xf]
    %v900 = vld [vmem:[#allocation8 + $0x74] sm:$0xf]
    %v901 = vld [vmem:[#allocation8 + $0x78] sm:$0xf]
    %v902 = vld [vmem:[#allocation8 + $0x7c] sm:$0xf]
    %v935 = vunpack.c.l.b16 %v871
    %v936 = vunpack.c.l.b16 %v872
    %v937 = vunpack.c.l.b16 %v873
    %v938 = vunpack.c.l.b16 %v874
    %v939 = vunpack.c.l.b16 %v875
    %v940 = vunpack.c.l.b16 %v876
    %v941 = vunpack.c.l.b16 %v877
    %v942 = vunpack.c.l.b16 %v878
    %v943 = vunpack.c.l.b16 %v879
    %v944 = vunpack.c.l.b16 %v880
    %v945 = vunpack.c.l.b16 %v881
    %v946 = vunpack.c.l.b16 %v882
    %v947 = vunpack.c.l.b16 %v883
    %v948 = vunpack.c.l.b16 %v884
    %v949 = vunpack.c.l.b16 %v885
    %v950 = vunpack.c.l.b16 %v886
    %v951 = vunpack.c.l.b16 %v887
    %v952 = vunpack.c.l.b16 %v888
    %v953 = vunpack.c.l.b16 %v889
    %v954 = vunpack.c.l.b16 %v890
    %v955 = vunpack.c.l.b16 %v891
    %v956 = vunpack.c.l.b16 %v892
    %v957 = vunpack.c.l.b16 %v893
    %v958 = vunpack.c.l.b16 %v894
    %v959 = vunpack.c.l.b16 %v895
    %v960 = vunpack.c.l.b16 %v896
    %v961 = vunpack.c.l.b16 %v897
    %v962 = vunpack.c.l.b16 %v898
    %v963 = vunpack.c.l.b16 %v899
    %v964 = vunpack.c.l.b16 %v900
    %v965 = vunpack.c.l.b16 %v901
    %v966 = vunpack.c.l.b16 %v902
    %v967 = vpack.c.b16 %v936, %v935
    %v968 = vpack.c.b16 %v938, %v937
    %v969 = vpack.c.b16 %v940, %v939
    %v970 = vpack.c.b16 %v942, %v941
    %v971 = vpack.c.b16 %v944, %v943
    %v972 = vpack.c.b16 %v946, %v945
    %v973 = vpack.c.b16 %v948, %v947
    %v974 = vpack.c.b16 %v950, %v949
    %v975 = vpack.c.b16 %v952, %v951
    %v976 = vpack.c.b16 %v954, %v953
    %v977 = vpack.c.b16 %v956, %v955
    %v978 = vpack.c.b16 %v958, %v957
    %v979 = vpack.c.b16 %v960, %v959
    %v980 = vpack.c.b16 %v962, %v961
    %v981 = vpack.c.b16 %v964, %v963
    %v982 = vpack.c.b16 %v966, %v965
    %999 = vmatprep.subr.bf16.mxu0 0
    %1000 = vmatpush1.bf16.msra.mxu0 %v967
    %1001 = vmatprep.subr.bf16.mxu0 0
    %1002 = vmatpush1.bf16.msra.mxu0 %v968
    %1003 = vmatprep.subr.bf16.mxu0 0
    %1004 = vmatpush1.bf16.msra.mxu0 %v969
    %1005 = vmatprep.subr.bf16.mxu0 0
    %1006 = vmatpush1.bf16.msra.mxu0 %v970
    %1007 = vmatprep.subr.bf16.mxu0 0
    %1008 = vmatpush1.bf16.msra.mxu0 %v971
    %1009 = vmatprep.subr.bf16.mxu0 0
    %1010 = vmatpush1.bf16.msra.mxu0 %v972
    %1011 = vmatprep.subr.bf16.mxu0 0
    %1012 = vmatpush1.bf16.msra.mxu0 %v973
    %1013 = vmatprep.subr.bf16.mxu0 0
    %1014 = vmatpush1.bf16.msra.mxu0 %v974
    %1015 = vmatprep.subr.bf16.mxu0 0
    %1016 = vmatpush1.bf16.msra.mxu0 %v975
    %1017 = vmatprep.subr.bf16.mxu0 0
    %1018 = vmatpush1.bf16.msra.mxu0 %v976
    %1019 = vmatprep.subr.bf16.mxu0 0
    %1020 = vmatpush1.bf16.msra.mxu0 %v977
    %1021 = vmatprep.subr.bf16.mxu0 0
    %1022 = vmatpush1.bf16.msra.mxu0 %v978
    %1023 = vmatprep.subr.bf16.mxu0 0
    %1024 = vmatpush1.bf16.msra.mxu0 %v979
    %1025 = vmatprep.subr.bf16.mxu0 0
    %1026 = vmatpush1.bf16.msra.mxu0 %v980
    %1027 = vmatprep.subr.bf16.mxu0 0
    %1028 = vmatpush1.bf16.msra.mxu0 %v981
    %1029 = vmatprep.subr.bf16.mxu0 0
    %1030 = vmatpush1.bf16.msra.mxu0 %v982
    %1031 = vmatprep.mubr.bf16.mxu0 %v870
    %1032 = vmatmul.mubr.bf16.gmra.mrb[0].mxu0 %v869
    %v1033 = vpop.f32.mrb[0].mxu0
    %v1034 = vadd.f32 0.0, %v1033
    %v1035 = vpop.f32.mrb[0].mxu0
    %v1036 = vpop.f32.mrb[0].mxu0
    %v1037 = vpop.f32.mrb[0].mxu0
    %1038 = vdwg.mxu0
    %1039 = vst [vmem:[#allocation10] sm:$0x3] %v1034
    // Predicated region
    $region38: #{tpu_custom_call.1} parent=1 // pred_check
      _
    $region39: #{tpu_custom_call.1} parent=1 // pred_check_branch
      %1041 = sbr.rel (0) target = $region41
    $region40: #{tpu_custom_call.1} parent=1 // pred_region
      %s1043 = ssub.s32 32, 32
      %1044 = vsyncadd [#allocation4], %s1043
      %s1046 = sshll.u32 [#allocation10], 4
      %s1047 = int_to_ptr.vmem [resolvable:$true] %s1046
      %1049 = dma.vmem_to_hbm [thread:$0]  %s1047, 32, %s5, [#allocation4]
    $region41: #{tpu_custom_call.1} parent=1 // pred_fallthru
      _
    // Predicated region
    $region42: #{tpu_custom_call.1} parent=1 // pred_check
      _
    $region43: #{tpu_custom_call.1} parent=1 // pred_check_branch
      %1051 = sbr.rel (0) target = $region45
    $region44: #{tpu_custom_call.1} parent=1 // pred_region
      %1052 = dma.done [#allocation4], 32
    $region45: #{tpu_custom_call.1} parent=1 // pred_fallthru
      _
    %1053 = vsyncpa [#allocation3], 1
    %1054 = vsyncpa [#allocation6], 1
    %1055 = vsyncpa [#allocation9], 1
    %1056 = vsyncpa [#allocation4], 1

</llo_original>
